<compile_context>
chip_gen: v7x
topology: tpu7x:2x2x1
jax: 0.10.0
libtpu: 0.0.40
codegen_flags: <defaults>
</compile_context>

<pallas_src>
import jax
import jax.numpy as jnp
from jax import lax
from jax.experimental import pallas as pl
from jax.experimental.pallas import tpu as pltpu

LANES = 128
SUBLANES = 8
_TILE_BYTES = 2 * 1024 * 1024          # per input tile buffer (double-buffered)
_VMEM_LIMIT = 32 * 1024 * 1024         # safe on v5e / v6e / v7x


def _round_up(x, m):
    return ((x + m - 1) // m) * m


def _log_sigmoid(x):
    # numerically stable log(sigmoid(x)) = min(x, 0) - log1p(exp(-|x|))
    return jnp.minimum(x, 0.0) - jnp.log1p(jnp.exp(-jnp.abs(x)))


def _num_cores():
    # Only v7x has 2 TensorCores per chip; the split is correct for any count.
    # TODO(synk): replace the device_kind heuristic with a firmer API.
    try:
        kind = jax.devices()[0].device_kind.lower()
        if "v7" in kind:
            return 2
    except Exception:
        pass
    return 1


def _choose_tile(b_rows, n_cols, itemsize):
    """Pick a row-tile: full array if small, else a multiple of 8 within budget."""
    row_bytes = max(1, n_cols * itemsize)
    if b_rows * row_bytes <= _TILE_BYTES:
        return b_rows                                  # single block (full dim: always legal)
    t = max(SUBLANES, (_TILE_BYTES // row_bytes) // SUBLANES * SUBLANES)
    return min(t, _round_up(b_rows, SUBLANES))


def _grid_layout(b_rows, tile_b, n_cores):
    nblk = -(-b_rows // tile_b)
    if nblk < n_cores:
        n_cores = 1                                    # tiny grid: don't split cores
    steps = -(-nblk // n_cores)
    ragged = (n_cores * steps * tile_b) != b_rows
    if n_cores * steps == nblk:                        # exact: plain index arithmetic
        n_map = lambda c, i: (c * steps + i, 0)
    else:                                              # clamp duplicated tail tiles (masked in-kernel)
        n_map = lambda c, i: (jnp.minimum(c * steps + i, nblk - 1), 0)
    return n_cores, steps, ragged, n_map


def _combine(out, n_cores):
    per_core = out.reshape(n_cores, SUBLANES, LANES)[:, 0, 0]
    return -0.5 * jnp.sum(per_core)


# ----------------------------------------------------------------------------
# Non-adversarial branch: loss = -(mean(logsig(p)) + mean(logsig(-n))) / 2
# ----------------------------------------------------------------------------
def _sigmoid_loss_plain(p_score, n_score, n_cores):
    p2 = p_score.reshape(1, -1)                        # metadata-only reshape
    n_cols = int(n_score.shape[-1]) if n_score.ndim else 1
    n2 = n_score.reshape(-1, n_cols)                   # metadata-only reshape
    b_rows = int(n2.shape[0])

    tile_b = _choose_tile(b_rows, n_cols, jnp.dtype(n2.dtype).itemsize)
    n_cores, steps, ragged, n_map = _grid_layout(b_rows, tile_b, n_cores)
    acc_rows = SUBLANES if tile_b % SUBLANES == 0 else 1

    inv_p = 1.0 / float(p_score.size)                  # true element counts
    inv_n = 1.0 / float(n_score.size)
    p_cols = int(p2.shape[1])

    def kernel(p_ref, n_ref, out_ref, acc_ref):
        c = pl.program_id(0)
        i = pl.program_id(1)

        @pl.when(i == 0)
        def _init():
            acc_ref[...] = jnp.zeros_like(acc_ref)

        vals = _log_sigmoid(-n_ref[...].astype(jnp.float32))   # (tile_b, N)
        if ragged:
            row0 = (c * steps + i) * tile_b
            rows = lax.broadcasted_iota(jnp.int32, vals.shape, 0) + row0
            vals = jnp.where(rows < b_rows, vals, 0.0)
        if acc_rows == SUBLANES:
            # layout-preserving sublane split -> pure VALU vreg adds, no per-step XLU
            acc_ref[...] += jnp.sum(
                vals.reshape(tile_b // SUBLANES, SUBLANES, n_cols), axis=0)
        else:
            acc_ref[...] += jnp.sum(vals, axis=0, keepdims=True)

        @pl.when(i == pl.num_programs(1) - 1)
        def _fin():
            neg = jnp.sum(acc_ref[...]) * inv_n
            pos = jnp.sum(_log_sigmoid(p_ref[...].astype(jnp.float32))) * inv_p
            val = jnp.where(c == 0, pos, 0.0) + neg    # p-term counted once
            out_ref[...] = jnp.full((SUBLANES, LANES), val, jnp.float32)

    out = pl.pallas_call(
        kernel,
        out_shape=jax.ShapeDtypeStruct((n_cores * SUBLANES, LANES), jnp.float32),
        grid=(n_cores, steps),
        in_specs=[
            pl.BlockSpec((1, p_cols), lambda c, i: (0, 0)),        # resident
            pl.BlockSpec((tile_b, n_cols), n_map),                 # pipelined
        ],
        out_specs=pl.BlockSpec((SUBLANES, LANES), lambda c, i: (c, 0)),
        scratch_shapes=[pltpu.VMEM((acc_rows, n_cols), jnp.float32)],
        compiler_params=pltpu.CompilerParams(
            dimension_semantics=("parallel", "arbitrary"),
            vmem_limit_bytes=_VMEM_LIMIT,
        ),
    )(p2, n2)
    return _combine(out, n_cores)


# ----------------------------------------------------------------------------
# Adversarial branch:
#   w = softmax(n * T, axis=-1)  (detached; forward-only here)
#   loss = -(mean(logsig(p)) + mean(sum(w * logsig(-n), -1))) / 2
# ----------------------------------------------------------------------------
def _sigmoid_loss_adv(p_score, n_score, adv_temperature, n_cores):
    p2 = p_score.reshape(1, -1)
    n_cols = int(n_score.shape[-1])
    n2 = n_score.reshape(-1, n_cols)
    b_rows = int(n2.shape[0])

    tile_b = _choose_tile(b_rows, n_cols, jnp.dtype(n2.dtype).itemsize)
    n_cores, steps, ragged, n_map = _grid_layout(b_rows, tile_b, n_cores)

    inv_p = 1.0 / float(p_score.size)
    inv_rows = 1.0 / float(b_rows)
    temp = float(adv_temperature)
    p_cols = int(p2.shape[1])

    def kernel(p_ref, n_ref, out_ref, acc_ref):
        c = pl.program_id(0)
        i = pl.program_id(1)

        @pl.when(i == 0)
        def _init():
            acc_ref[...] = jnp.zeros_like(acc_ref)

        n = n_ref[...].astype(jnp.float32)             # (tile_b, N), full N (no col pad)
        z = n * temp
        m = jnp.max(z, axis=-1, keepdims=True)
        e = jnp.exp(z - m)                             # unnormalized softmax weights
        num = jnp.sum(e * _log_sigmoid(-n), axis=-1, keepdims=True)
        den = jnp.sum(e, axis=-1, keepdims=True)
        # one reciprocal per row (EUP) instead of a [tile_b, N] broadcast divide
        row_term = num * pl.reciprocal(den, approx=True)          # (tile_b, 1)
        if ragged:
            row0 = (c * steps + i) * tile_b
            rows = lax.broadcasted_iota(jnp.int32, row_term.shape, 0) + row0
            row_term = jnp.where(rows < b_rows, row_term, 0.0)
        acc_ref[...] += row_term                        # column partials; no per-step scalar RMW

        @pl.when(i == pl.num_programs(1) - 1)
        def _fin():
            neg = jnp.sum(acc_ref[...]) * inv_rows
            pos = jnp.sum(_log_sigmoid(p_ref[...].astype(jnp.float32))) * inv_p
            val = jnp.where(c == 0, pos, 0.0) + neg
            out_ref[...] = jnp.full((SUBLANES, LANES), val, jnp.float32)

    out = pl.pallas_call(
        kernel,
        out_shape=jax.ShapeDtypeStruct((n_cores * SUBLANES, LANES), jnp.float32),
        grid=(n_cores, steps),
        in_specs=[
            pl.BlockSpec((1, p_cols), lambda c, i: (0, 0)),        # resident
            pl.BlockSpec((tile_b, n_cols), n_map),                 # pipelined
        ],
        out_specs=pl.BlockSpec((SUBLANES, LANES), lambda c, i: (c, 0)),
        scratch_shapes=[pltpu.VMEM((tile_b, 1), jnp.float32)],
        compiler_params=pltpu.CompilerParams(
            dimension_semantics=("parallel", "arbitrary"),
            vmem_limit_bytes=_VMEM_LIMIT,
        ),
    )(p2, n2)
    return _combine(out, n_cores)


def sigmoid_loss(p_score, n_score, adv_temperature=None):
    """Pallas implementation of SigmoidLoss.forward. Returns a scalar f32."""
    n_cores = _num_cores()
    if adv_temperature is None:
        return _sigmoid_loss_plain(p_score, n_score, n_cores)
    return _sigmoid_loss_adv(p_score, n_score, adv_temperature, n_cores)


# ----------------------------------------------------------------------------
# Pure-JAX reference (matches the PyTorch module's forward)
# ----------------------------------------------------------------------------
def _reference_loss(p_score, n_score, adv_temperature=None):
    ls = jax.nn.log_sigmoid
    if adv_temperature is None:
        return -(jnp.mean(ls(p_score)) + jnp.mean(ls(-n_score))) / 2.0
    w = jax.nn.softmax(n_score * adv_temperature, axis=-1)
    return -(jnp.mean(ls(p_score))
             + jnp.mean(jnp.sum(w * ls(-n_score), axis=-1))) / 2.0


if __name__ == "__main__":
    key = jax.random.PRNGKey(0)
    kp, kn, kp2, kn2, kp3, kn3 = jax.random.split(key, 6)
    adv_t = 1.0

    # Small shapes consistent with the module: batch of triples, N negatives.
    B, N = 8, 16
    p1 = jax.random.normal(kp, (B, 1), dtype=jnp.float32)
    n1 = jax.random.normal(kn, (B, N), dtype=jnp.float32)

    l1 = jax.block_until_ready(sigmoid_loss(p1, n1))
    r1 = _reference_loss(p1, n1)
    assert jnp.allclose(l1, r1, rtol=1e-5, atol=1e-5), (l1, r1)

    l1a = jax.block_until_ready(sigmoid_loss(p1, n1, adv_t))
    r1a = _reference_loss(p1, n1, adv_t)
    assert jnp.allclose(l1a, r1a, rtol=2e-3, atol=2e-3), (l1a, r1a)

    # Medium shapes (single-block path, no wrapper-side copies at all).
    B2, N2 = 600, 200
    p2 = jax.random.normal(kp2, (B2, 1), dtype=jnp.float32)
    n2 = jax.random.normal(kn2, (B2, N2), dtype=jnp.float32)

    l2 = jax.block_until_ready(sigmoid_loss(p2, n2))
    r2 = _reference_loss(p2, n2)
    assert jnp.allclose(l2, r2, rtol=1e-4, atol=1e-4), (l2, r2)

    l2a = jax.block_until_ready(sigmoid_loss(p2, n2, adv_t))
    r2a = _reference_loss(p2, n2, adv_t)
    assert jnp.allclose(l2a, r2a, rtol=2e-3, atol=2e-3), (l2a, r2a)

    # Larger shapes: multi-tile streaming grid with a ragged (masked) last tile.
    B3, N3 = 4100, 300
    p3 = jax.random.normal(kp3, (B3, 1), dtype=jnp.float32)
    n3 = jax.random.normal(kn3, (B3, N3), dtype=jnp.float32)

    l3 = jax.block_until_ready(sigmoid_loss(p3, n3))
    r3 = _reference_loss(p3, n3)
    assert jnp.allclose(l3, r3, rtol=1e-4, atol=1e-4), (l3, r3)

    l3a = jax.block_until_ready(sigmoid_loss(p3, n3, adv_t))
    r3a = _reference_loss(p3, n3, adv_t)
    assert jnp.allclose(l3a, r3a, rtol=2e-3, atol=2e-3), (l3a, r3a)

    # bf16 inputs: streamed at half the HBM bytes, upcast happens in-kernel.
    pb = p2.astype(jnp.bfloat16)
    nb = n2.astype(jnp.bfloat16)
    lb = jax.block_until_ready(sigmoid_loss(pb, nb))
    rb = _reference_loss(pb.astype(jnp.float32), nb.astype(jnp.float32))
    assert jnp.allclose(lb, rb, rtol=1e-4, atol=1e-4), (lb, rb)

    print("KERNEL_OK")
</pallas_src>

<mosaic_0001>
module attributes {stable_mosaic.version = 11 : i64} {
  func.func @kernel(%arg0: i32, %arg1: i32, %arg2: memref<1x8xf32, #tpu.memory_space<vmem>>, %arg3: memref<8x16xf32, #tpu.memory_space<vmem>>, %arg4: memref<8x128xf32, #tpu.memory_space<vmem>>, %arg5: memref<8x16xf32, #tpu.memory_space<vmem>>) attributes {dimension_semantics = [#tpu.dimension_semantics<parallel>, #tpu.dimension_semantics<arbitrary>], iteration_bounds = array<i64: 1, 1>, scalar_prefetch = 0 : i64, scratch_operands = 1 : i64, tpu.core_type = #tpu.core_type<tc>, window_params = [{pipeline_mode = #tpu.pipeline_mode<synchronous>, transform_indices = @transform_0, window_bounds = array<i64: 1, 8>}, {transform_indices = @transform_1, window_bounds = array<i64: 8, 16>}, {transform_indices = @transform_2, window_bounds = array<i64: 8, 128>}]} {
    %c0_i32 = arith.constant 0 : i32
    %0 = arith.cmpi eq, %arg1, %c0_i32 : i32
    %1 = arith.extui %0 : i1 to i32
    %c0_i32_0 = arith.constant 0 : i32
    %2 = arith.cmpi ne, %1, %c0_i32_0 : i32
    scf.if %2 {
      %cst_11 = arith.constant 0.000000e+00 : f32
      %22 = vector.broadcast %cst_11 : f32 to vector<8x16xf32>
      %c0_12 = arith.constant 0 : index
      %c0_13 = arith.constant 0 : index
      %23 = vector.load %arg5[%c0_12, %c0_13] : memref<8x16xf32, #tpu.memory_space<vmem>>, vector<8x16xf32>
      tpu.vector_store %arg5[%c0_12, %c0_13], %22 {strides = array<i32>} : memref<8x16xf32, #tpu.memory_space<vmem>>, vector<8x16xf32>,
    } else {
    }
    %c0 = arith.constant 0 : index
    %c0_1 = arith.constant 0 : index
    %3 = vector.load %arg3[%c0, %c0_1] : memref<8x16xf32, #tpu.memory_space<vmem>>, vector<8x16xf32>
    %cst = arith.constant 0.000000e+00 : f32
    %4 = vector.broadcast %cst : f32 to vector<8x16xf32>
    %5 = arith.subf %4, %3 : vector<8x16xf32>
    %cst_2 = arith.constant 0.000000e+00 : f32
    %6 = vector.broadcast %cst_2 : f32 to vector<8x16xf32>
    %7 = arith.minimumf %5, %6 : vector<8x16xf32>
    %8 = math.absf %5 : vector<8x16xf32>
    %cst_3 = arith.constant 0.000000e+00 : f32
    %9 = vector.broadcast %cst_3 : f32 to vector<8x16xf32>
    %10 = arith.subf %9, %8 : vector<8x16xf32>
    %11 = math.exp %10 : vector<8x16xf32>
    %12 = math.log1p %11 : vector<8x16xf32>
    %13 = arith.subf %7, %12 : vector<8x16xf32>
    %c0_4 = arith.constant 0 : index
    %c0_5 = arith.constant 0 : index
    %14 = vector.load %arg5[%c0_4, %c0_5] : memref<8x16xf32, #tpu.memory_space<vmem>>, vector<8x16xf32>
    %15 = vector.shape_cast %13 : vector<8x16xf32> to vector<1x8x16xf32>
    %cst_6 = arith.constant dense<0.000000e+00> : vector<8x16xf32>
    %16 = vector.multi_reduction <add>, %15, %cst_6 [0] : vector<1x8x16xf32> to vector<8x16xf32>
    %17 = arith.addf %14, %16 : vector<8x16xf32>
    %c0_7 = arith.constant 0 : index
    %c0_8 = arith.constant 0 : index
    %18 = vector.load %arg5[%c0_7, %c0_8] : memref<8x16xf32, #tpu.memory_space<vmem>>, vector<8x16xf32>
    tpu.vector_store %arg5[%c0_7, %c0_8], %17 {strides = array<i32>} : memref<8x16xf32, #tpu.memory_space<vmem>>, vector<8x16xf32>,
    %c0_i32_9 = arith.constant 0 : i32
    %19 = arith.cmpi eq, %arg1, %c0_i32_9 : i32
    %20 = arith.extui %19 : i1 to i32
    %c0_i32_10 = arith.constant 0 : i32
    %21 = arith.cmpi ne, %20, %c0_i32_10 : i32
    scf.if %21 {
      %c0_11 = arith.constant 0 : index
      %c0_12 = arith.constant 0 : index
      %22 = vector.load %arg5[%c0_11, %c0_12] : memref<8x16xf32, #tpu.memory_space<vmem>>, vector<8x16xf32>
      %23 = vector.shape_cast %22 : vector<8x16xf32> to vector<1x8x16xf32>
      %cst_13 = arith.constant dense<0.000000e+00> : vector<1xf32>
      %24 = vector.multi_reduction <add>, %23, %cst_13 [1, 2] : vector<1x8x16xf32> to vector<1xf32>
      %25 = vector.shape_cast %24 : vector<1xf32> to vector<1x1x1xf32>
      %26 = vector.extract %25[0, 0, 0] : f32 from vector<1x1x1xf32>
      %cst_14 = arith.constant 7.812500e-03 : f32
      %27 = arith.mulf %26, %cst_14 : f32
      %c0_15 = arith.constant 0 : index
      %c0_16 = arith.constant 0 : index
      %28 = vector.load %arg2[%c0_15, %c0_16] : memref<1x8xf32, #tpu.memory_space<vmem>>, vector<1x8xf32>
      %cst_17 = arith.constant 0.000000e+00 : f32
      %29 = vector.broadcast %cst_17 : f32 to vector<1x8xf32>
      %30 = arith.minimumf %28, %29 : vector<1x8xf32>
      %31 = math.absf %28 : vector<1x8xf32>
      %cst_18 = arith.constant 0.000000e+00 : f32
      %32 = vector.broadcast %cst_18 : f32 to vector<1x8xf32>
      %33 = arith.subf %32, %31 : vector<1x8xf32>
      %34 = math.exp %33 : vector<1x8xf32>
      %35 = math.log1p %34 : vector<1x8xf32>
      %36 = arith.subf %30, %35 : vector<1x8xf32>
      %37 = vector.shape_cast %36 : vector<1x8xf32> to vector<1x1x8xf32>
      %cst_19 = arith.constant dense<0.000000e+00> : vector<1xf32>
      %38 = vector.multi_reduction <add>, %37, %cst_19 [1, 2] : vector<1x1x8xf32> to vector<1xf32>
      %39 = vector.shape_cast %38 : vector<1xf32> to vector<1x1x1xf32>
      %40 = vector.extract %39[0, 0, 0] : f32 from vector<1x1x1xf32>
      %cst_20 = arith.constant 1.250000e-01 : f32
      %41 = arith.mulf %40, %cst_20 : f32
      %c0_i32_21 = arith.constant 0 : i32
      %42 = arith.cmpi eq, %arg0, %c0_i32_21 : i32
      %cst_22 = arith.constant 0.000000e+00 : f32
      %43 = arith.select %42, %41, %cst_22 : f32
      %44 = arith.addf %43, %27 : f32
      %45 = vector.broadcast %44 : f32 to vector<8x128xf32>
      %c0_23 = arith.constant 0 : index
      %c0_24 = arith.constant 0 : index
      %46 = vector.load %arg4[%c0_23, %c0_24] : memref<8x128xf32, #tpu.memory_space<vmem>>, vector<8x128xf32>
      tpu.vector_store %arg4[%c0_23, %c0_24], %45 {strides = array<i32>} : memref<8x128xf32, #tpu.memory_space<vmem>>, vector<8x128xf32>,
    } else {
    }
    return
  }
  func.func @transform_0(%arg0: i32, %arg1: i32) -> (i32, i32) {
    %c0_i32 = arith.constant 0 : i32
    %c0_i32_0 = arith.constant 0 : i32
    %c0_i32_1 = arith.constant 0 : i32
    return %c0_i32, %c0_i32_0 : i32, i32
  }
  func.func @transform_1(%arg0: i32, %arg1: i32) -> (i32, i32) {
    %c1_i32 = arith.constant 1 : i32
    %0 = arith.muli %arg0, %c1_i32 : i32
    %1 = arith.addi %0, %arg1 : i32
    %c0_i32 = arith.constant 0 : i32
    %c0_i32_0 = arith.constant 0 : i32
    return %1, %c0_i32 : i32, i32
  }
  func.func @transform_2(%arg0: i32, %arg1: i32) -> (i32, i32) {
    %c0_i32 = arith.constant 0 : i32
    %c0_i32_0 = arith.constant 0 : i32
    return %arg0, %c0_i32 : i32, i32
  }
}

</mosaic_0001>

<llo_original>
// kernel: tpu_custom_call.1
$region0: #{tpu_custom_call.1}
  #allocation0 [shape = 'u32[]', space=smem, size = 0x4, offset = 0x4, fixed_abs, tag = 'smem constant byte address 0x4 - core index']
  #allocation1 [shape = 'u32[144,128]{1,0:T(1,128)}', space=vmem, size = 0x12000, scoped, tag = 'internal scratch']
  #allocation2 [shape = 'f32[8,16]{1,0:T(8,128)}', space=vmem, size = 0x1000, scoped, tag = 'scratch operand']
  %s0 = inlined_call_operand.hbm [shape: f32[1,8], index: 0, kind: input, shape index: {}]
  %s1 = inlined_call_operand.hbm [shape: f32[8,16], index: 1, kind: input, shape index: {}]
  %s2 = inlined_call_operand.hbm [shape: f32[8,128], index: 2, kind: output, shape index: {}]
  %s3 = sld [smem:[#allocation0]]
  $region34: #{tpu_custom_call.1} parent=0
    _
  %s5 = ssub.s32 1, %s3
  %s6 = scalar_select 0, %s5, %s3
  $region1: #{tpu_custom_call.1} parent=0
    #allocation3 [shape = 'u8[512]{0}', space=vmem, size = 0x400, scoped, tag = 'input window, operand 0, single buffered']
    #allocation4 [shape = 's32[1]{0}', space=sflag, size = 0x4, scoped, tag = 'scoped memory for tpu_custom_call.1']
    #allocation5 [shape = 's32[1]{0}', space=sflag, size = 0x4, scoped, tag = 'scoped memory for tpu_custom_call.1']
    #allocation6 [shape = 'u8[4096]{0}', space=vmem, size = 0x1000, scoped, tag = 'input window, operand 1, single buffered']
    #allocation7 [shape = 's32[1]{0}', space=sflag, size = 0x4, scoped, tag = 'scoped memory for tpu_custom_call.1']
    #allocation8 [shape = 'u8[4096]{0}', space=vmem, size = 0x1000, scoped, tag = 'output window, operand 0, single buffered']
    %7 = vsyncpa [#allocation4], 0
    %8 = vsyncpa [#allocation7], 0
    %9 = vsyncpa [#allocation5], 0
    // Predicated region
    $region2: #{tpu_custom_call.1} parent=1 // pred_check
      _
    $region3: #{tpu_custom_call.1} parent=1 // pred_check_branch
      %11 = sbr.rel (0) target = $region5
    $region4: #{tpu_custom_call.1} parent=1 // pred_region
      %s13 = ssub.s32 16, 16
      %14 = vsyncadd [#allocation4], %s13
      %s16 = sshll.u32 [#allocation3], 4
      %s17 = int_to_ptr.vmem [resolvable:$true] %s16
      %19 = dma.hbm_to_vmem [thread:$0]  %s0, 16, %s17, [#allocation4]
    $region5: #{tpu_custom_call.1} parent=1 // pred_fallthru
      _
    // Predicated region
    $region6: #{tpu_custom_call.1} parent=1 // pred_check
      _
    $region7: #{tpu_custom_call.1} parent=1 // pred_check_branch
      %21 = sbr.rel (0) target = $region9
    $region8: #{tpu_custom_call.1} parent=1 // pred_region
      %s22 = sadd.s32 0, 0
      %s24 = ssub.s32 128, 128
      %25 = vsyncadd [#allocation7], %s24
      %s26 = smul.addr %s22, 128
      %s27 = scalar_lea.hbm %s1, %s26
      %s29 = sshll.u32 [#allocation6], 4
      %s30 = int_to_ptr.vmem [resolvable:$true] %s29
      %32 = dma.hbm_to_vmem [thread:$0]  %s27, 128, %s30, [#allocation7]
    $region9: #{tpu_custom_call.1} parent=1 // pred_fallthru
      _
    // Predicated region
    $region10: #{tpu_custom_call.1} parent=1 // pred_check
      _
    $region11: #{tpu_custom_call.1} parent=1 // pred_check_branch
      %34 = sbr.rel (0) target = $region13
    $region12: #{tpu_custom_call.1} parent=1 // pred_region
      %35 = dma.done [#allocation4], 16
    $region13: #{tpu_custom_call.1} parent=1 // pred_fallthru
      _
    // Predicated region
    $region14: #{tpu_custom_call.1} parent=1 // pred_check
      _
    $region15: #{tpu_custom_call.1} parent=1 // pred_check_branch
      %37 = sbr.rel (0) target = $region17
    $region16: #{tpu_custom_call.1} parent=1 // pred_region
      %38 = dma.done [#allocation7], 128
    $region17: #{tpu_custom_call.1} parent=1 // pred_fallthru
      _
    %s39 = sadd.s32 0, 0
    %p40 = scmp.eq.s32.totalorder 0, 0
    // Predicated region
    $region18: #{tpu_custom_call.1} parent=1 // pred_check
      %p41 = pneg %p40
    $region19: #{tpu_custom_call.1} parent=1 // pred_check_branch
      %43 = sbr.rel (%p41) target = $region21
    $region20: #{tpu_custom_call.1} parent=1 // pred_region
      %vm44 = vcmask 130048
      %45 = vst.msk [vmem:[#allocation2] sm:$0xff] %vm44, 0.0
    $region21: #{tpu_custom_call.1} parent=1 // pred_fallthru
      _
    %v46 = vld [vmem:[#allocation6] sm:$0xff]
    %v47 = vsub.f32 0.0, %v46
    %v48 = vmin.f32 %v47, 0.0
    %v49 = vand.u32 2147483647, %v47
    %v50 = vsub.f32 0.0, %v49
    %v51 = vmul.f32 %v50, 1.442695
    %v52 = vpow.pop %v51
    %v53 = vadd.f32 %v52, 1.0
    %v54 = vlog2.pop %v53
    %v55 = vmul.f32 %v54, 0.6931472
    %v56 = vmul.f32 -0.5, %v52
    %v57 = vadd.f32 %v56, 1.0
    %v58 = vmul.f32 %v57, %v52
    %v59 = vand.u32 2147483647, %v52
    %vm60 = vcmp.lt.f32.partialorder %v59, 0.0004427343
    %v61 = vsel %vm60, %v58, %v55
    %v62 = vsub.f32 %v48, %v61
    %v63 = vld [vmem:[#allocation2] sm:$0xff]
    %v64 = vadd.f32 %v62, 0.0
    %v65 = vadd.f32 %v63, %v64
    %vm66 = vcmask 130048
    %67 = vst.msk [vmem:[#allocation2] sm:$0xff] %vm66, %v65
    // Predicated region
    $region22: #{tpu_custom_call.1} parent=1 // pred_check
      %p68 = pneg %p40
    $region23: #{tpu_custom_call.1} parent=1 // pred_check_branch
      %70 = sbr.rel (%p68) target = $region25
    $region24: #{tpu_custom_call.1} parent=1 // pred_region
      %v71 = vld [vmem:[#allocation2] sm:$0xff]
      %v72 = vsel %vm66, %v71, 0.0
      %73 = vadd.xlane.f32.xlu0 %v72
      %v74 = vpop.xlane.xlu0 %73
      %v75 = vrot.slane %v74, 4
      %v76 = vadd.f32 %v74, %v75
      %v77 = vrot.slane %v76, 2
      %v78 = vadd.f32 %v76, %v77
      %v79 = vrot.slane %v78, 1
      %v80 = vadd.f32 %v78, %v79
      %s81 = vtos %v80
      %s82 = smul.f32 %s81, 0.0078125
      %v83 = vld [vmem:[#allocation3] sm:$0x1]
      %v84 = vmin.f32 %v83, 0.0
      %v85 = vand.u32 2147483647, %v83
      %v86 = vsub.f32 0.0, %v85
      %v87 = vmul.f32 %v86, 1.442695
      %v88 = vpow.pop %v87
      %v89 = vadd.f32 %v88, 1.0
      %v90 = vlog2.pop %v89
      %v91 = vmul.f32 %v90, 0.6931472
      %v92 = vmul.f32 -0.5, %v88
      %v93 = vadd.f32 %v92, 1.0
      %v94 = vmul.f32 %v93, %v88
      %v95 = vand.u32 2147483647, %v88
      %vm96 = vcmp.lt.f32.partialorder %v95, 0.0004427343
      %v97 = vsel %vm96, %v94, %v91
      %v98 = vsub.f32 %v84, %v97
      %vm99 = vcmask 57344
      %v100 = vsel %vm99, %v98, 0.0
      %101 = vadd.xlane.f32.xlu0 %v100
      %v102 = vpop.xlane.xlu0 %101
      %v103 = vrot.slane %v102, 4
      %v104 = vadd.f32 %v102, %v103
      %v105 = vrot.slane %v104, 2
      %v106 = vadd.f32 %v104, %v105
      %v107 = vrot.slane %v106, 1
      %v108 = vadd.f32 %v106, %v107
      %s109 = vtos %v108
      %s110 = smul.f32 %s109, 0.125
      %p111 = scmp.eq.s32.totalorder 0, 0
      %s112 = scalar_select %p111, %s110, 0.0
      %s113 = sadd.f32 %s112, %s82
      %v114 = vstv %s113
      %115 = vst [vmem:[#allocation8] sm:$0xff] %v114
    $region25: #{tpu_custom_call.1} parent=1 // pred_fallthru
      _
    // Predicated region
    $region26: #{tpu_custom_call.1} parent=1 // pred_check
      _
    $region27: #{tpu_custom_call.1} parent=1 // pred_check_branch
      %117 = sbr.rel (0) target = $region29
    $region28: #{tpu_custom_call.1} parent=1 // pred_region
      %s119 = ssub.s32 128, 128
      %120 = vsyncadd [#allocation5], %s119
      %s122 = sshll.u32 [#allocation8], 4
      %s123 = int_to_ptr.vmem [resolvable:$true] %s122
      %125 = dma.vmem_to_hbm [thread:$0]  %s123, 128, %s2, [#allocation5]
    $region29: #{tpu_custom_call.1} parent=1 // pred_fallthru
      _
    // Predicated region
    $region30: #{tpu_custom_call.1} parent=1 // pred_check
      _
    $region31: #{tpu_custom_call.1} parent=1 // pred_check_branch
      %127 = sbr.rel (0) target = $region33
    $region32: #{tpu_custom_call.1} parent=1 // pred_region
      %128 = dma.done [#allocation5], 128
    $region33: #{tpu_custom_call.1} parent=1 // pred_fallthru
      _
    %129 = vsyncpa [#allocation4], 1
    %130 = vsyncpa [#allocation7], 1
    %131 = vsyncpa [#allocation5], 1

</llo_original>
